<compile_context>
chip_gen: v7x
topology: tpu7x:2x2x1
jax: 0.10.0
libtpu: 0.0.40
codegen_flags: <defaults>
</compile_context>

<pallas_src>
import functools
import math

import jax
import jax.numpy as jnp
from jax.experimental import pallas as pl
from jax.experimental.pallas import tpu as pltpu


def _activation(h, name):
    if name == "relu":
        return jnp.maximum(h, 0.0)
    elif name == "tanh":
        return jnp.tanh(h)
    elif name == "leaky_relu":
        return jnp.where(h > 0, h, 0.01 * h)
    else:  # unknown/absent activation string -> identity (matches the PyTorch module)
        return h


def _mlp_kernel(*refs, num_layers, activation):
    # refs = (xT_ref, w0, b0, w1, b1, ..., w_last_col, b_last, o_ref)
    xT_ref = refs[0]
    o_ref = refs[-1]
    p = refs[1:-1]

    # h: [features, tile_b] -- batch on the lane axis.
    h = xT_ref[...].astype(jnp.float32)

    # Hidden layers: MXU matmul (operands in the weights' dtype, f32 accumulation),
    # bias add + activation on the VPU.
    for li in range(num_layers - 1):
        w = p[2 * li][...]          # [out, in]   (compute_dtype)
        b = p[2 * li + 1][...]      # [out, 1]    (f32), broadcast along lanes
        h = jnp.dot(w, h.astype(w.dtype), preferred_element_type=jnp.float32) + b
        h = _activation(h, activation)

    # Final layer (out_features == 1): VPU multiply + sublane reduction instead of a
    # degenerate N=1 matmul; result is already lane-dense [1, tile_b].
    w_col = p[-2][...].astype(jnp.float32)   # [hidden, 1]
    b_last = p[-1][...]                      # [1, 1]
    logit = jnp.sum(w_col * h, axis=0, keepdims=True) + b_last   # [1, tile_b]

    # Sigmoid: exp on the EUP, reciprocal also on the EUP (approx).
    out = pl.reciprocal(1.0 + jnp.exp(-logit), approx=True)
    o_ref[...] = out.astype(o_ref.dtype)


def _pad_to(n, m):
    return ((n + m - 1) // m) * m


def neural_net_forward(x, params, activation, *, tile_b=256,
                       compute_dtype=jnp.float32):
    """MLP forward pass in a single Pallas kernel, tiled over the (padded) batch.

    x:      [B, input_size] float32
    params: list of (W, b):
              hidden layers: W [out, in], b [out, 1]
              last layer:    W [in, 1] (column form), b [1, 1]
    Returns [B, 1] float32.
    """
    B, F = x.shape
    num_layers = len(params)

    assert tile_b % 128 == 0 and tile_b > 0, "tile_b must be a positive multiple of 128"
    # Don't use a tile wider than the padded batch actually needs.
    tile_b = min(tile_b, _pad_to(B, 128))

    # Pad the batch to a multiple of tile_b and transpose so batch sits on the lane
    # axis. Padding columns are zero and sliced away in the wrapper.
    B_pad = pl.cdiv(B, tile_b) * tile_b
    xT = jnp.zeros((F, B_pad), jnp.float32).at[:, :B].set(x.T.astype(jnp.float32))

    in_specs = [pl.BlockSpec((F, tile_b), lambda i: (0, i))]
    flat_params = []
    for li, (w, b) in enumerate(params):
        if li < num_layers - 1:
            w_k = w.astype(compute_dtype)      # MXU operand dtype (bf16 on v6e/v7x)
        else:
            w_k = w.astype(jnp.float32)        # final column weight stays f32 (VPU path)
        b_k = b.astype(jnp.float32)
        # Full-block, constant index_map -> DMA'd once, resident across batch tiles.
        in_specs.append(pl.BlockSpec(w_k.shape, lambda i: (0, 0)))
        in_specs.append(pl.BlockSpec(b_k.shape, lambda i: (0, 0)))
        flat_params.extend([w_k, b_k])

    out_spec = pl.BlockSpec((1, tile_b), lambda i: (0, i))   # lane-dense output block

    # Explicit VMEM budget: double-buffered x/out tiles + resident params, with headroom.
    est = _pad_to(F, 8) * tile_b * 4 + 8 * tile_b * 4
    for a in flat_params:
        r, c = a.shape
        est += _pad_to(r, 8) * _pad_to(c, 128) * a.dtype.itemsize
    est *= 2  # double buffering
    vmem_limit = int(min(64 * 1024 * 1024, max(32 * 1024 * 1024, 2 * est)))

    kernel = functools.partial(_mlp_kernel, num_layers=num_layers, activation=activation)

    outT = pl.pallas_call(
        kernel,
        out_shape=jax.ShapeDtypeStruct((1, B_pad), jnp.float32),
        grid_spec=pltpu.PrefetchScalarGridSpec(
            num_scalar_prefetch=0,
            grid=(B_pad // tile_b,),
            in_specs=in_specs,
            out_specs=out_spec,
        ),
        compiler_params=pltpu.CompilerParams(
            dimension_semantics=("parallel",),
            vmem_limit_bytes=vmem_limit,
        ),
    )(xT, *flat_params)

    # Wrapper-side layout plumbing back to the module's [B, 1] output.
    return outT[0, :B].reshape(B, 1)


def init_params(key, input_size, hidden_layers):
    """Mimics nn.Linear default init U(-1/sqrt(fan_in), +1/sqrt(fan_in)).

    Hidden layers stored as W [out, in], b [out, 1]; last layer as W [in, 1], b [1, 1].
    """
    sizes = [input_size] + list(hidden_layers) + [1]
    params = []
    for i in range(len(sizes) - 1):
        fan_in, fan_out = sizes[i], sizes[i + 1]
        bound = 1.0 / math.sqrt(fan_in)
        key, kw, kb = jax.random.split(key, 3)
        if i < len(sizes) - 2:
            W = jax.random.uniform(kw, (fan_out, fan_in), jnp.float32, -bound, bound)
            b = jax.random.uniform(kb, (fan_out, 1), jnp.float32, -bound, bound)
        else:  # final layer, column form
            W = jax.random.uniform(kw, (fan_in, 1), jnp.float32, -bound, bound)
            b = jax.random.uniform(kb, (1, 1), jnp.float32, -bound, bound)
        params.append((W, b))
    return params


def reference_forward(x, params, activation):
    h = x
    n = len(params)
    for li, (w, b) in enumerate(params):
        if li < n - 1:
            h = h @ w.T + b.T
            h = _activation(h, activation)
        else:
            h = h @ w + b
            h = jax.nn.sigmoid(h)
    return h


if __name__ == "__main__":
    key = jax.random.PRNGKey(0)

    batch = 200               # non-multiple of 128 -> exercises the padding path
    input_size = 32
    hidden_layers = [64, 32]
    activation = "relu"

    key, kx = jax.random.split(key)
    x = jax.random.normal(kx, (batch, input_size), jnp.float32)
    params = init_params(key, input_size, hidden_layers)

    ref = reference_forward(x, params, activation)

    # Default path: tile_b=256 -> single grid step for B=200 (padded to 256).
    # Tolerance accounts for the approx-EUP reciprocal in the sigmoid; outputs in [0,1].
    out = neural_net_forward(x, params, activation)
    out = jax.block_until_ready(out)
    assert out.shape == (batch, 1), out.shape
    assert jnp.allclose(out, ref, atol=5e-3, rtol=5e-3), float(jnp.max(jnp.abs(out - ref)))

    # Multi-tile grid path (tile_b=128 -> 2 grid steps) with bf16 MXU operands
    # (v6e/v7x throughput option); looser tolerance.
    out_bf16 = neural_net_forward(x, params, activation, tile_b=128,
                                  compute_dtype=jnp.bfloat16)
    out_bf16 = jax.block_until_ready(out_bf16)
    assert out_bf16.shape == (batch, 1), out_bf16.shape
    assert jnp.allclose(out_bf16, ref, atol=3e-2, rtol=3e-2), \
        float(jnp.max(jnp.abs(out_bf16 - ref)))

    print("KERNEL_OK")
</pallas_src>

<mosaic_0001>
module attributes {stable_mosaic.version = 11 : i64} {
  func.func @_mlp_kernel(%arg0: i32, %arg1: memref<32x256xf32, #tpu.memory_space<vmem>>, %arg2: memref<64x32xf32, #tpu.memory_space<vmem>>, %arg3: memref<64x1xf32, #tpu.memory_space<vmem>>, %arg4: memref<32x64xf32, #tpu.memory_space<vmem>>, %arg5: memref<32x1xf32, #tpu.memory_space<vmem>>, %arg6: memref<32x1xf32, #tpu.memory_space<vmem>>, %arg7: memref<1x1xf32, #tpu.memory_space<vmem>>, %arg8: memref<1x256xf32, #tpu.memory_space<vmem>>) attributes {dimension_semantics = [#tpu.dimension_semantics<parallel>], iteration_bounds = array<i64: 1>, scalar_prefetch = 0 : i64, scratch_operands = 0 : i64, tpu.core_type = #tpu.core_type<tc>, window_params = [{transform_indices = @transform_0, window_bounds = array<i64: 32, 256>}, {pipeline_mode = #tpu.pipeline_mode<synchronous>, transform_indices = @transform_1, window_bounds = array<i64: 64, 32>}, {pipeline_mode = #tpu.pipeline_mode<synchronous>, transform_indices = @transform_2, window_bounds = array<i64: 64, 1>}, {pipeline_mode = #tpu.pipeline_mode<synchronous>, transform_indices = @transform_3, window_bounds = array<i64: 32, 64>}, {pipeline_mode = #tpu.pipeline_mode<synchronous>, transform_indices = @transform_4, window_bounds = array<i64: 32, 1>}, {pipeline_mode = #tpu.pipeline_mode<synchronous>, transform_indices = @transform_5, window_bounds = array<i64: 32, 1>}, {pipeline_mode = #tpu.pipeline_mode<synchronous>, transform_indices = @transform_6, window_bounds = array<i64: 1, 1>}, {transform_indices = @transform_7, window_bounds = array<i64: 1, 256>}]} {
    %c0 = arith.constant 0 : index
    %c0_0 = arith.constant 0 : index
    %0 = vector.load %arg1[%c0, %c0_0] : memref<32x256xf32, #tpu.memory_space<vmem>>, vector<32x256xf32>
    %c0_1 = arith.constant 0 : index
    %c0_2 = arith.constant 0 : index
    %1 = vector.load %arg2[%c0_1, %c0_2] : memref<64x32xf32, #tpu.memory_space<vmem>>, vector<64x32xf32>
    %c0_3 = arith.constant 0 : index
    %c0_4 = arith.constant 0 : index
    %2 = vector.load %arg3[%c0_3, %c0_4] : memref<64x1xf32, #tpu.memory_space<vmem>>, vector<64x1xf32>
    %cst = arith.constant dense<0.000000e+00> : vector<64x256xf32>
    %3 = tpu.matmul %1, %0, %cst {dimension_numbers = #tpu.dot_dimension_numbers<[1], [0], [0], [1], [0, 0, 1, 1], [], []>} : vector<64x32xf32>, vector<32x256xf32>, vector<64x256xf32> -> vector<64x256xf32>
    %4 = vector.broadcast %2 : vector<64x1xf32> to vector<64x256xf32>
    %5 = arith.addf %3, %4 : vector<64x256xf32>
    %cst_5 = arith.constant 0.000000e+00 : f32
    %6 = vector.broadcast %cst_5 : f32 to vector<64x256xf32>
    %7 = arith.maximumf %5, %6 : vector<64x256xf32>
    %c0_6 = arith.constant 0 : index
    %c0_7 = arith.constant 0 : index
    %8 = vector.load %arg4[%c0_6, %c0_7] : memref<32x64xf32, #tpu.memory_space<vmem>>, vector<32x64xf32>
    %c0_8 = arith.constant 0 : index
    %c0_9 = arith.constant 0 : index
    %9 = vector.load %arg5[%c0_8, %c0_9] : memref<32x1xf32, #tpu.memory_space<vmem>>, vector<32x1xf32>
    %cst_10 = arith.constant dense<0.000000e+00> : vector<32x256xf32>
    %10 = tpu.matmul %8, %7, %cst_10 {dimension_numbers = #tpu.dot_dimension_numbers<[1], [0], [0], [1], [0, 0, 1, 1], [], []>} : vector<32x64xf32>, vector<64x256xf32>, vector<32x256xf32> -> vector<32x256xf32>
    %11 = vector.broadcast %9 : vector<32x1xf32> to vector<32x256xf32>
    %12 = arith.addf %10, %11 : vector<32x256xf32>
    %cst_11 = arith.constant 0.000000e+00 : f32
    %13 = vector.broadcast %cst_11 : f32 to vector<32x256xf32>
    %14 = arith.maximumf %12, %13 : vector<32x256xf32>
    %c0_12 = arith.constant 0 : index
    %c0_13 = arith.constant 0 : index
    %15 = vector.load %arg6[%c0_12, %c0_13] : memref<32x1xf32, #tpu.memory_space<vmem>>, vector<32x1xf32>
    %c0_14 = arith.constant 0 : index
    %c0_15 = arith.constant 0 : index
    %16 = vector.load %arg7[%c0_14, %c0_15] : memref<1x1xf32, #tpu.memory_space<vmem>>, vector<1x1xf32>
    %17 = vector.broadcast %15 : vector<32x1xf32> to vector<32x256xf32>
    %18 = arith.mulf %17, %14 : vector<32x256xf32>
    %cst_16 = arith.constant dense<0.000000e+00> : vector<256xf32>
    %19 = vector.multi_reduction <add>, %18, %cst_16 [0] : vector<32x256xf32> to vector<256xf32>
    %20 = vector.shape_cast %19 : vector<256xf32> to vector<1x256xf32>
    %21 = vector.broadcast %16 : vector<1x1xf32> to vector<1x256xf32>
    %22 = arith.addf %20, %21 : vector<1x256xf32>
    %cst_17 = arith.constant 0.000000e+00 : f32
    %23 = vector.broadcast %cst_17 : f32 to vector<1x256xf32>
    %24 = arith.subf %23, %22 : vector<1x256xf32>
    %25 = math.exp %24 : vector<1x256xf32>
    %cst_18 = arith.constant 1.000000e+00 : f32
    %26 = vector.broadcast %cst_18 : f32 to vector<1x256xf32>
    %27 = arith.addf %26, %25 : vector<1x256xf32>
    %28 = tpu.reciprocal %27 {approx = true} : vector<1x256xf32> -> vector<1x256xf32>
    %c0_19 = arith.constant 0 : index
    %c0_20 = arith.constant 0 : index
    %29 = vector.load %arg8[%c0_19, %c0_20] : memref<1x256xf32, #tpu.memory_space<vmem>>, vector<1x256xf32>
    tpu.vector_store %arg8[%c0_19, %c0_20], %28 {strides = array<i32>} : memref<1x256xf32, #tpu.memory_space<vmem>>, vector<1x256xf32>,
    return
  }
  func.func @transform_0(%arg0: i32) -> (i32, i32) {
    %c0_i32 = arith.constant 0 : i32
    %c0_i32_0 = arith.constant 0 : i32
    return %c0_i32, %arg0 : i32, i32
  }
  func.func @transform_1(%arg0: i32) -> (i32, i32) {
    %c0_i32 = arith.constant 0 : i32
    %c0_i32_0 = arith.constant 0 : i32
    %c0_i32_1 = arith.constant 0 : i32
    return %c0_i32, %c0_i32_0 : i32, i32
  }
  func.func @transform_2(%arg0: i32) -> (i32, i32) {
    %c0_i32 = arith.constant 0 : i32
    %c0_i32_0 = arith.constant 0 : i32
    %c0_i32_1 = arith.constant 0 : i32
    return %c0_i32, %c0_i32_0 : i32, i32
  }
  func.func @transform_3(%arg0: i32) -> (i32, i32) {
    %c0_i32 = arith.constant 0 : i32
    %c0_i32_0 = arith.constant 0 : i32
    %c0_i32_1 = arith.constant 0 : i32
    return %c0_i32, %c0_i32_0 : i32, i32
  }
  func.func @transform_4(%arg0: i32) -> (i32, i32) {
    %c0_i32 = arith.constant 0 : i32
    %c0_i32_0 = arith.constant 0 : i32
    %c0_i32_1 = arith.constant 0 : i32
    return %c0_i32, %c0_i32_0 : i32, i32
  }
  func.func @transform_5(%arg0: i32) -> (i32, i32) {
    %c0_i32 = arith.constant 0 : i32
    %c0_i32_0 = arith.constant 0 : i32
    %c0_i32_1 = arith.constant 0 : i32
    return %c0_i32, %c0_i32_0 : i32, i32
  }
  func.func @transform_6(%arg0: i32) -> (i32, i32) {
    %c0_i32 = arith.constant 0 : i32
    %c0_i32_0 = arith.constant 0 : i32
    %c0_i32_1 = arith.constant 0 : i32
    return %c0_i32, %c0_i32_0 : i32, i32
  }
  func.func @transform_7(%arg0: i32) -> (i32, i32) {
    %c0_i32 = arith.constant 0 : i32
    %c0_i32_0 = arith.constant 0 : i32
    return %c0_i32, %arg0 : i32, i32
  }
}

</mosaic_0001>

<llo_original>
// kernel: tpu_custom_call.1
$region0: #{tpu_custom_call.1}
  #allocation0 [shape = 'u32[]', space=smem, size = 0x4, offset = 0x4, fixed_abs, tag = 'smem constant byte address 0x4 - core index']
  #allocation1 [shape = 'u32[144,128]{1,0:T(1,128)}', space=vmem, size = 0x12000, scoped, tag = 'internal scratch']
  #allocation2 [shape = 'f32[1,1]{1,0:T(1,128)S(1)}', space=vmem, size = 0x200, scoped, tag = 'scoped memory for tpu_custom_call.1']
  %s0 = inlined_call_operand.vmem [shape: f32[32,256], index: 0, kind: input, shape index: {}]
  %s1 = inlined_call_operand.vmem [shape: f32[64,32], index: 1, kind: input, shape index: {}]
  %s2 = inlined_call_operand.vmem [shape: f32[64,1], index: 2, kind: input, shape index: {}]
  %s3 = inlined_call_operand.vmem [shape: f32[32,64], index: 3, kind: input, shape index: {}]
  %s4 = inlined_call_operand.vmem [shape: f32[32,1], index: 4, kind: input, shape index: {}]
  %s5 = inlined_call_operand.vmem [shape: f32[32,1], index: 5, kind: input, shape index: {}]
  %s6 = inlined_call_operand.<no memory space> [shape: f32[1,1], index: 6, kind: input, shape index: {}]
  %s7 = inlined_call_operand.hbm [shape: f32[1,256], index: 7, kind: output, shape index: {}]
  %s8 = sld [smem:[#allocation0]]
  $region38: #{tpu_custom_call.1} parent=0
    _
  %s10 = ssub.s32 1, %s8
  %s11 = scalar_select 0, %s10, %s8
  %v12 = vstv %s6
  %13 = vst [vmem:[#allocation2] sm:$0x1] %v12
  $region1: #{tpu_custom_call.1} parent=0
    #allocation3 [shape = 'u8[1024]{0}', space=vmem, size = 0x400, scoped, tag = 'output window, operand 0, single buffered']
    #allocation4 [shape = 's32[1]{0}', space=sflag, size = 0x4, scoped, tag = 'scoped memory for tpu_custom_call.1']
    %14 = vsyncpa [#allocation4], 0
    // Predicated region
    $region2: #{tpu_custom_call.1} parent=1 // pred_check
      _
    $region3: #{tpu_custom_call.1} parent=1 // pred_check_branch
      %16 = sbr.rel (0) target = $region5
    $region4: #{tpu_custom_call.1} parent=1 // pred_region
      _
    $region5: #{tpu_custom_call.1} parent=1 // pred_fallthru
      _
    // Predicated region
    $region6: #{tpu_custom_call.1} parent=1 // pred_check
      _
    $region7: #{tpu_custom_call.1} parent=1 // pred_check_branch
      %18 = sbr.rel (0) target = $region9
    $region8: #{tpu_custom_call.1} parent=1 // pred_region
      _
    $region9: #{tpu_custom_call.1} parent=1 // pred_fallthru
      _
    // Predicated region
    $region10: #{tpu_custom_call.1} parent=1 // pred_check
      _
    $region11: #{tpu_custom_call.1} parent=1 // pred_check_branch
      %20 = sbr.rel (0) target = $region13
    $region12: #{tpu_custom_call.1} parent=1 // pred_region
      _
    $region13: #{tpu_custom_call.1} parent=1 // pred_fallthru
      _
    // Predicated region
    $region14: #{tpu_custom_call.1} parent=1 // pred_check
      _
    $region15: #{tpu_custom_call.1} parent=1 // pred_check_branch
      %22 = sbr.rel (0) target = $region17
    $region16: #{tpu_custom_call.1} parent=1 // pred_region
      _
    $region17: #{tpu_custom_call.1} parent=1 // pred_fallthru
      _
    // Predicated region
    $region18: #{tpu_custom_call.1} parent=1 // pred_check
      _
    $region19: #{tpu_custom_call.1} parent=1 // pred_check_branch
      %24 = sbr.rel (0) target = $region21
    $region20: #{tpu_custom_call.1} parent=1 // pred_region
      _
    $region21: #{tpu_custom_call.1} parent=1 // pred_fallthru
      _
    // Predicated region
    $region22: #{tpu_custom_call.1} parent=1 // pred_check
      _
    $region23: #{tpu_custom_call.1} parent=1 // pred_check_branch
      %26 = sbr.rel (0) target = $region25
    $region24: #{tpu_custom_call.1} parent=1 // pred_region
      _
    $region25: #{tpu_custom_call.1} parent=1 // pred_fallthru
      _
    // Predicated region
    $region26: #{tpu_custom_call.1} parent=1 // pred_check
      _
    $region27: #{tpu_custom_call.1} parent=1 // pred_check_branch
      %28 = sbr.rel (0) target = $region29
    $region28: #{tpu_custom_call.1} parent=1 // pred_region
      _
    $region29: #{tpu_custom_call.1} parent=1 // pred_fallthru
      _
    %v29 = vld [vmem:[%s0] sm:$0xff]
    %v30 = vld [vmem:[%s0 + $0x8] sm:$0xff]
    %v31 = vld [vmem:[%s0 + $0x10] sm:$0xff]
    %v32 = vld [vmem:[%s0 + $0x18] sm:$0xff]
    %v33 = vld [vmem:[%s0 + $0x20] sm:$0xff]
    %v34 = vld [vmem:[%s0 + $0x28] sm:$0xff]
    %v35 = vld [vmem:[%s0 + $0x30] sm:$0xff]
    %v36 = vld [vmem:[%s0 + $0x38] sm:$0xff]
    %v37 = vld [vmem:[%s1] sm:$0xff]
    %v38 = vld [vmem:[%s1 + $0x8] sm:$0xff]
    %v39 = vld [vmem:[%s1 + $0x10] sm:$0xff]
    %v40 = vld [vmem:[%s1 + $0x18] sm:$0xff]
    %v41 = vld [vmem:[%s1 + $0x20] sm:$0xff]
    %v42 = vld [vmem:[%s1 + $0x28] sm:$0xff]
    %v43 = vld [vmem:[%s1 + $0x30] sm:$0xff]
    %v44 = vld [vmem:[%s1 + $0x38] sm:$0xff]
    %v45 = vld [vmem:[%s2] sm:$0xff]
    %v46 = vld [vmem:[%s2 + $0x8] sm:$0xff]
    %v47 = vld [vmem:[%s2 + $0x10] sm:$0xff]
    %v48 = vld [vmem:[%s2 + $0x18] sm:$0xff]
    %v49 = vld [vmem:[%s2 + $0x20] sm:$0xff]
    %v50 = vld [vmem:[%s2 + $0x28] sm:$0xff]
    %v51 = vld [vmem:[%s2 + $0x30] sm:$0xff]
    %v52 = vld [vmem:[%s2 + $0x38] sm:$0xff]
    %54 = vset.pattern.permute.xlu0 0
    %55 = vperm.xlu0 %54, %v45
    %v56 = vpop.permute.xlu0 %55
    %59 = vset.pattern.permute.xlu0 0
    %60 = vperm.xlu0 %59, %v46
    %v61 = vpop.permute.xlu0 %60
    %64 = vset.pattern.permute.xlu0 0
    %65 = vperm.xlu0 %64, %v47
    %v66 = vpop.permute.xlu0 %65
    %69 = vset.pattern.permute.xlu0 0
    %70 = vperm.xlu0 %69, %v48
    %v71 = vpop.permute.xlu0 %70
    %74 = vset.pattern.permute.xlu0 0
    %75 = vperm.xlu0 %74, %v49
    %v76 = vpop.permute.xlu0 %75
    %79 = vset.pattern.permute.xlu0 0
    %80 = vperm.xlu0 %79, %v50
    %v81 = vpop.permute.xlu0 %80
    %84 = vset.pattern.permute.xlu0 0
    %85 = vperm.xlu0 %84, %v51
    %v86 = vpop.permute.xlu0 %85
    %89 = vset.pattern.permute.xlu0 0
    %90 = vperm.xlu0 %89, %v52
    %v91 = vpop.permute.xlu0 %90
    %vm93 = vcmask 261120
    %v95 = vsel %vm93, %v37, 0
    %v98 = vsel %vm93, %v38, 0
    %v101 = vsel %vm93, %v39, 0
    %v104 = vsel %vm93, %v40, 0
    %v107 = vsel %vm93, %v41, 0
    %v110 = vsel %vm93, %v42, 0
    %v113 = vsel %vm93, %v43, 0
    %v116 = vsel %vm93, %v44, 0
    %118 = vmatprep.subr.mxu0 %v30
    %119 = vmatpush1.msra.mxu0 %v29
    %120 = vmatprep.subr.mxu0 %v32
    %121 = vmatpush1.msra.mxu0 %v31
    %122 = vmatprep.subr.mxu0 %v34
    %123 = vmatpush1.msra.mxu0 %v33
    %124 = vmatprep.subr.mxu0 %v36
    %125 = vmatpush1.msra.mxu0 %v35
    %126 = vmatprep.subr.mxu0 0.0
    %127 = vmatpush1.msra.mxu0 0.0
    %128 = vmatprep.subr.mxu0 0.0
    %129 = vmatpush1.msra.mxu0 0.0
    %130 = vmatprep.subr.mxu0 0.0
    %131 = vmatpush1.msra.mxu0 0.0
    %132 = vmatprep.subr.mxu0 0.0
    %133 = vmatpush1.msra.mxu0 0.0
    %134 = vmatprep.subr.mxu0 0.0
    %135 = vmatpush1.msra.mxu0 0.0
    %136 = vmatprep.subr.mxu0 0.0
    %137 = vmatpush1.msra.mxu0 0.0
    %138 = vmatprep.subr.mxu0 0.0
    %139 = vmatpush1.msra.mxu0 0.0
    %140 = vmatprep.subr.mxu0 0.0
    %141 = vmatpush1.msra.mxu0 0.0
    %142 = vmatprep.subr.mxu0 0.0
    %143 = vmatpush1.msra.mxu0 0.0
    %144 = vmatprep.subr.mxu0 0.0
    %145 = vmatpush1.msra.mxu0 0.0
    %146 = vmatprep.subr.mxu0 0.0
    %147 = vmatpush1.msra.mxu0 0.0
    %148 = vmatprep.subr.mxu0 0.0
    %149 = vmatpush1.msra.mxu0 0.0
    %150 = vmatprep.subr.mxu0 0.0
    %151 = vmatpush1.msra.mxu0 0.0
    %152 = vmatprep.subr.mxu0 0.0
    %153 = vmatpush1.msra.mxu0 0.0
    %154 = vmatprep.subr.mxu0 0.0
    %155 = vmatpush1.msra.mxu0 0.0
    %156 = vmatprep.subr.mxu0 0.0
    %157 = vmatpush1.msra.mxu0 0.0
    %158 = vmatprep.subr.mxu0 0.0
    %159 = vmatpush1.msra.mxu0 0.0
    %160 = vmatprep.subr.mxu0 0.0
    %161 = vmatpush1.msra.mxu0 0.0
    %162 = vmatprep.subr.mxu0 0.0
    %163 = vmatpush1.msra.mxu0 0.0
    %164 = vmatprep.subr.mxu0 0.0
    %165 = vmatpush1.msra.mxu0 0.0
    %166 = vmatprep.subr.mxu0 0.0
    %167 = vmatpush1.msra.mxu0 0.0
    %168 = vmatprep.subr.mxu0 0.0
    %169 = vmatpush1.msra.mxu0 0.0
    %170 = vmatprep.subr.mxu0 0.0
    %171 = vmatpush1.msra.mxu0 0.0
    %172 = vmatprep.subr.mxu0 0.0
    %173 = vmatpush1.msra.mxu0 0.0
    %174 = vmatprep.subr.mxu0 0.0
    %175 = vmatpush1.msra.mxu0 0.0
    %176 = vmatprep.subr.mxu0 0.0
    %177 = vmatpush1.msra.mxu0 0.0
    %178 = vmatprep.subr.mxu0 0.0
    %179 = vmatpush1.msra.mxu0 0.0
    %180 = vmatprep.subr.mxu0 0.0
    %181 = vmatpush1.msra.mxu0 0.0
    %182 = vmatprep.mubr.f32.mxu0 0.0
    %183 = vmatmul.mubr.f32.gmra.mrb[0].mxu0 %v95
    %v184 = vpop.f32.mrb[0].mxu0
    %v185 = vadd.f32 %v56, %v184
    %v186 = vpop.f32.mrb[0].mxu0
    %v187 = vadd.f32 %v56, %v186
    %188 = vmatprep.mubr.f32.mxu0 0.0
    %189 = vmatmul.mubr.f32.gmra.mrb[0].mxu0 %v98
    %v190 = vpop.f32.mrb[0].mxu0
    %v191 = vadd.f32 %v61, %v190
    %v192 = vpop.f32.mrb[0].mxu0
    %v193 = vadd.f32 %v61, %v192
    %194 = vmatprep.mubr.f32.mxu0 0.0
    %195 = vmatmul.mubr.f32.gmra.mrb[0].mxu0 %v101
    %v196 = vpop.f32.mrb[0].mxu0
    %v197 = vadd.f32 %v66, %v196
    %v198 = vpop.f32.mrb[0].mxu0
    %v199 = vadd.f32 %v66, %v198
    %200 = vmatprep.mubr.f32.mxu0 0.0
    %201 = vmatmul.mubr.f32.gmra.mrb[0].mxu0 %v104
    %v202 = vpop.f32.mrb[0].mxu0
    %v203 = vadd.f32 %v71, %v202
    %v204 = vpop.f32.mrb[0].mxu0
    %v205 = vadd.f32 %v71, %v204
    %206 = vmatprep.mubr.f32.mxu0 0.0
    %207 = vmatmul.mubr.f32.gmra.mrb[0].mxu0 %v107
    %v208 = vpop.f32.mrb[0].mxu0
    %v209 = vadd.f32 %v76, %v208
    %v210 = vpop.f32.mrb[0].mxu0
    %v211 = vadd.f32 %v76, %v210
    %212 = vmatprep.mubr.f32.mxu0 0.0
    %213 = vmatmul.mubr.f32.gmra.mrb[0].mxu0 %v110
    %v214 = vpop.f32.mrb[0].mxu0
    %v215 = vadd.f32 %v81, %v214
    %v216 = vpop.f32.mrb[0].mxu0
    %v217 = vadd.f32 %v81, %v216
    %218 = vmatprep.mubr.f32.mxu0 0.0
    %219 = vmatmul.mubr.f32.gmra.mrb[0].mxu0 %v113
    %v220 = vpop.f32.mrb[0].mxu0
    %v221 = vadd.f32 %v86, %v220
    %v222 = vpop.f32.mrb[0].mxu0
    %v223 = vadd.f32 %v86, %v222
    %224 = vmatprep.mubr.f32.mxu0 0.0
    %225 = vmatmul.mubr.f32.gmra.mrb[0].mxu0 %v116
    %v226 = vpop.f32.mrb[0].mxu0
    %v227 = vadd.f32 %v91, %v226
    %v228 = vpop.f32.mrb[0].mxu0
    %v229 = vadd.f32 %v91, %v228
    %230 = vdwg.mxu0
    %v231 = vmax.f32 %v185, 0.0
    %v232 = vmax.f32 %v187, 0.0
    %v233 = vmax.f32 %v191, 0.0
    %v234 = vmax.f32 %v193, 0.0
    %v235 = vmax.f32 %v197, 0.0
    %v236 = vmax.f32 %v199, 0.0
    %v237 = vmax.f32 %v203, 0.0
    %v238 = vmax.f32 %v205, 0.0
    %v239 = vmax.f32 %v209, 0.0
    %v240 = vmax.f32 %v211, 0.0
    %v241 = vmax.f32 %v215, 0.0
    %v242 = vmax.f32 %v217, 0.0
    %v243 = vmax.f32 %v221, 0.0
    %v244 = vmax.f32 %v223, 0.0
    %v245 = vmax.f32 %v227, 0.0
    %v246 = vmax.f32 %v229, 0.0
    %v247 = vld [vmem:[%s3] sm:$0xff]
    %v248 = vld [vmem:[%s3 + $0x8] sm:$0xff]
    %v249 = vld [vmem:[%s3 + $0x10] sm:$0xff]
    %v250 = vld [vmem:[%s3 + $0x18] sm:$0xff]
    %v251 = vld [vmem:[%s4] sm:$0xff]
    %v252 = vld [vmem:[%s4 + $0x8] sm:$0xff]
    %v253 = vld [vmem:[%s4 + $0x10] sm:$0xff]
    %v254 = vld [vmem:[%s4 + $0x18] sm:$0xff]
    %256 = vset.pattern.permute.xlu0 0
    %257 = vperm.xlu0 %256, %v251
    %v258 = vpop.permute.xlu0 %257
    %261 = vset.pattern.permute.xlu0 0
    %262 = vperm.xlu0 %261, %v252
    %v263 = vpop.permute.xlu0 %262
    %266 = vset.pattern.permute.xlu0 0
    %267 = vperm.xlu0 %266, %v253
    %v268 = vpop.permute.xlu0 %267
    %271 = vset.pattern.permute.xlu0 0
    %272 = vperm.xlu0 %271, %v254
    %v273 = vpop.permute.xlu0 %272
    %vm275 = vcmask 523264
    %v277 = vsel %vm275, %v247, 0
    %v280 = vsel %vm275, %v248, 0
    %v283 = vsel %vm275, %v249, 0
    %v286 = vsel %vm275, %v250, 0
    %288 = vmatprep.subr.mxu0 %v232
    %289 = vmatpush1.msra.mxu0 %v231
    %290 = vmatprep.subr.mxu0 %v234
    %291 = vmatpush1.msra.mxu0 %v233
    %292 = vmatprep.subr.mxu0 %v236
    %293 = vmatpush1.msra.mxu0 %v235
    %294 = vmatprep.subr.mxu0 %v238
    %295 = vmatpush1.msra.mxu0 %v237
    %296 = vmatprep.subr.mxu0 %v240
    %297 = vmatpush1.msra.mxu0 %v239
    %298 = vmatprep.subr.mxu0 %v242
    %299 = vmatpush1.msra.mxu0 %v241
    %300 = vmatprep.subr.mxu0 %v244
    %301 = vmatpush1.msra.mxu0 %v243
    %302 = vmatprep.subr.mxu0 %v246
    %303 = vmatpush1.msra.mxu0 %v245
    %304 = vmatprep.subr.mxu0 0.0
    %305 = vmatpush1.msra.mxu0 0.0
    %306 = vmatprep.subr.mxu0 0.0
    %307 = vmatpush1.msra.mxu0 0.0
    %308 = vmatprep.subr.mxu0 0.0
    %309 = vmatpush1.msra.mxu0 0.0
    %310 = vmatprep.subr.mxu0 0.0
    %311 = vmatpush1.msra.mxu0 0.0
    %312 = vmatprep.subr.mxu0 0.0
    %313 = vmatpush1.msra.mxu0 0.0
    %314 = vmatprep.subr.mxu0 0.0
    %315 = vmatpush1.msra.mxu0 0.0
    %316 = vmatprep.subr.mxu0 0.0
    %317 = vmatpush1.msra.mxu0 0.0
    %318 = vmatprep.subr.mxu0 0.0
    %319 = vmatpush1.msra.mxu0 0.0
    %320 = vmatprep.subr.mxu0 0.0
    %321 = vmatpush1.msra.mxu0 0.0
    %322 = vmatprep.subr.mxu0 0.0
    %323 = vmatpush1.msra.mxu0 0.0
    %324 = vmatprep.subr.mxu0 0.0
    %325 = vmatpush1.msra.mxu0 0.0
    %326 = vmatprep.subr.mxu0 0.0
    %327 = vmatpush1.msra.mxu0 0.0
    %328 = vmatprep.subr.mxu0 0.0
    %329 = vmatpush1.msra.mxu0 0.0
    %330 = vmatprep.subr.mxu0 0.0
    %331 = vmatpush1.msra.mxu0 0.0
    %332 = vmatprep.subr.mxu0 0.0
    %333 = vmatpush1.msra.mxu0 0.0
    %334 = vmatprep.subr.mxu0 0.0
    %335 = vmatpush1.msra.mxu0 0.0
    %336 = vmatprep.subr.mxu0 0.0
    %337 = vmatpush1.msra.mxu0 0.0
    %338 = vmatprep.subr.mxu0 0.0
    %339 = vmatpush1.msra.mxu0 0.0
    %340 = vmatprep.subr.mxu0 0.0
    %341 = vmatpush1.msra.mxu0 0.0
    %342 = vmatprep.subr.mxu0 0.0
    %343 = vmatpush1.msra.mxu0 0.0
    %344 = vmatprep.subr.mxu0 0.0
    %345 = vmatpush1.msra.mxu0 0.0
    %346 = vmatprep.subr.mxu0 0.0
    %347 = vmatpush1.msra.mxu0 0.0
    %348 = vmatprep.subr.mxu0 0.0
    %349 = vmatpush1.msra.mxu0 0.0
    %350 = vmatprep.subr.mxu0 0.0
    %351 = vmatpush1.msra.mxu0 0.0
    %352 = vmatprep.mubr.f32.mxu0 0.0
    %353 = vmatmul.mubr.f32.gmra.mrb[0].mxu0 %v277
    %v354 = vpop.f32.mrb[0].mxu0
    %v355 = vadd.f32 %v258, %v354
    %v356 = vpop.f32.mrb[0].mxu0
    %v357 = vadd.f32 %v258, %v356
    %358 = vmatprep.mubr.f32.mxu0 0.0
    %359 = vmatmul.mubr.f32.gmra.mrb[0].mxu0 %v280
    %v360 = vpop.f32.mrb[0].mxu0
    %v361 = vadd.f32 %v263, %v360
    %v362 = vpop.f32.mrb[0].mxu0
    %v363 = vadd.f32 %v263, %v362
    %364 = vmatprep.mubr.f32.mxu0 0.0
    %365 = vmatmul.mubr.f32.gmra.mrb[0].mxu0 %v283
    %v366 = vpop.f32.mrb[0].mxu0
    %v367 = vadd.f32 %v268, %v366
    %v368 = vpop.f32.mrb[0].mxu0
    %v369 = vadd.f32 %v268, %v368
    %370 = vmatprep.mubr.f32.mxu0 0.0
    %371 = vmatmul.mubr.f32.gmra.mrb[0].mxu0 %v286
    %v372 = vpop.f32.mrb[0].mxu0
    %v373 = vadd.f32 %v273, %v372
    %v374 = vpop.f32.mrb[0].mxu0
    %v375 = vadd.f32 %v273, %v374
    %376 = vdwg.mxu0
    %v377 = vmax.f32 %v355, 0.0
    %v378 = vmax.f32 %v357, 0.0
    %v379 = vmax.f32 %v361, 0.0
    %v380 = vmax.f32 %v363, 0.0
    %v381 = vmax.f32 %v367, 0.0
    %v382 = vmax.f32 %v369, 0.0
    %v383 = vmax.f32 %v373, 0.0
    %v384 = vmax.f32 %v375, 0.0
    %v385 = vld [vmem:[%s5] sm:$0xff]
    %v386 = vld [vmem:[%s5 + $0x8] sm:$0xff]
    %v387 = vld [vmem:[%s5 + $0x10] sm:$0xff]
    %v388 = vld [vmem:[%s5 + $0x18] sm:$0xff]
    %v389 = vld [vmem:[#allocation2] sm:$0x1]
    %391 = vset.pattern.permute.xlu0 0
    %392 = vperm.xlu0 %391, %v385
    %v393 = vpop.permute.xlu0 %392
    %396 = vset.pattern.permute.xlu0 0
    %397 = vperm.xlu0 %396, %v386
    %v398 = vpop.permute.xlu0 %397
    %401 = vset.pattern.permute.xlu0 0
    %402 = vperm.xlu0 %401, %v387
    %v403 = vpop.permute.xlu0 %402
    %406 = vset.pattern.permute.xlu0 0
    %407 = vperm.xlu0 %406, %v388
    %v408 = vpop.permute.xlu0 %407
    %v410 = vmul.f32 %v393, %v377
    %v411 = vmul.f32 %v393, %v378
    %v412 = vmul.f32 %v398, %v379
    %v413 = vmul.f32 %v398, %v380
    %v414 = vmul.f32 %v403, %v381
    %v415 = vmul.f32 %v403, %v382
    %v416 = vmul.f32 %v408, %v383
    %v417 = vmul.f32 %v408, %v384
    %v418 = vadd.f32 %v410, %v412
    %v419 = vadd.f32 %v418, %v414
    %v420 = vadd.f32 %v419, %v416
    %v421 = vrot.slane %v420, 4
    %v422 = vadd.f32 %v420, %v421
    %v423 = vrot.slane %v422, 2
    %v424 = vadd.f32 %v422, %v423
    %v425 = vrot.slane %v424, 1
    %v426 = vadd.f32 %v424, %v425
    %v427 = vadd.f32 %v411, %v413
    %v428 = vadd.f32 %v427, %v415
    %v429 = vadd.f32 %v428, %v417
    %v430 = vrot.slane %v429, 4
    %v431 = vadd.f32 %v429, %v430
    %v432 = vrot.slane %v431, 2
    %v433 = vadd.f32 %v431, %v432
    %v434 = vrot.slane %v433, 1
    %v435 = vadd.f32 %v433, %v434
    %437 = vset.pattern.permute.xlu0 0
    %438 = vperm.xlu0 %437, %v389
    %v439 = vpop.permute.xlu0 %438
    %v441 = vlaneseq
    %v442 = vshrl.u32 %v441, 7
    %v443 = vsub.s32 0, %v442
    %v444 = vrot.slane %v439, %v443
    %v445 = vadd.f32 %v426, %v444
    %v446 = vadd.f32 %v435, %v444
    %v447 = vsub.f32 0.0, %v445
    %v448 = vsub.f32 0.0, %v446
    %v449 = vmul.f32 %v447, 1.442695
    %v450 = vpow.pop %v449
    %v451 = vmul.f32 %v448, 1.442695
    %v452 = vpow.pop %v451
    %v453 = vadd.f32 %v450, 1.0
    %v454 = vadd.f32 %v452, 1.0
    %v455 = vrcp.pop %v453
    %v456 = vrcp.pop %v454
    %v459 = vcombine.low %v455, %v456
    %v461 = vunpack.c.l.s4 1966171168
    %v462 = vunpack.c.0.s8 %v461
    %v463 = vlaneseq
    %v464 = vshrl.u32 %v463, 7
    %v465 = vsub.s32 %v462, %v464
    %v466 = vrot.slane %v459, %v465
    %v468 = vunpack.c.l.s4 1966171168
    %v469 = vunpack.c.0.s8 %v468
    %v470 = vlaneseq
    %v471 = vshrl.u32 %v470, 7
    %v472 = vsub.s32 %v469, %v471
    %v473 = vrot.slane %v466, %v472
    %v475 = vlaneseq
    %vm476 = vcmp.ge.s32.totalorder %v475, 0
    %vm477 = vcmp.lt.s32.totalorder %v475, 256
    %vm478 = vmand %vm476, %vm477
    %479 = vst.msk [vmem:[#allocation3] sm:$0x3] %vm478, %v473
    // Predicated region
    $region30: #{tpu_custom_call.1} parent=1 // pred_check
      _
    $region31: #{tpu_custom_call.1} parent=1 // pred_check_branch
      %481 = sbr.rel (0) target = $region33
    $region32: #{tpu_custom_call.1} parent=1 // pred_region
      %s483 = ssub.s32 32, 32
      %484 = vsyncadd [#allocation4], %s483
      %s486 = sshll.u32 [#allocation3], 4
      %s487 = int_to_ptr.vmem [resolvable:$true] %s486
      %489 = dma.vmem_to_hbm [thread:$0]  %s487, 32, %s7, [#allocation4]
    $region33: #{tpu_custom_call.1} parent=1 // pred_fallthru
      _
    // Predicated region
    $region34: #{tpu_custom_call.1} parent=1 // pred_check
      _
    $region35: #{tpu_custom_call.1} parent=1 // pred_check_branch
      %491 = sbr.rel (0) target = $region37
    $region36: #{tpu_custom_call.1} parent=1 // pred_region
      %492 = dma.done [#allocation4], 32
    $region37: #{tpu_custom_call.1} parent=1 // pred_fallthru
      _
    %493 = vsyncpa [#allocation4], 1

</llo_original>
